<compile_context>
chip_gen: v7x
topology: tpu7x:2x2x1
jax: 0.10.0
libtpu: 0.0.40
codegen_flags: <defaults>
</compile_context>

<pallas_src>
import jax
import jax.numpy as jnp
from jax.experimental import pallas as pl
from jax.experimental.pallas import tpu as pltpu


ROW_ALIGN = 16          # batch-tile granularity (covers bf16 2-rows-per-sublane packing)
MIN_PARALLEL_TILE = 256  # don't shrink tiles below this just to create grid steps


def _round_up(n, m):
    return ((n + m - 1) // m) * m


def _maybe_cast(a, dt):
    return a if a.dtype == dt else a.astype(dt)


def autoencoder_kernel(x_ref,
                       w1_ref, b1_ref,
                       w2_ref, b2_ref,
                       w3_ref, b3_ref,
                       w4_ref, b4_ref,
                       o_ref):
    """Fused 4-layer MLP forward on one batch tile (everything resident in VMEM).

    Matmul operands use the weights' (narrow) dtype and accumulate in f32 on
    the MXU; bias add / ReLU / sigmoid stay in f32 on the VPU/EUP.
    """
    cdt = w1_ref.dtype
    x = x_ref[...].astype(cdt)                                   # in-kernel cast (no wrapper pass)

    # encoder: Linear(input_dim, 2E) -> ReLU
    h = jnp.dot(x, w1_ref[...], preferred_element_type=jnp.float32) + b1_ref[...]
    h = jnp.maximum(h, 0.0)
    # encoder: Linear(2E, E) -> ReLU
    h = jnp.dot(h.astype(cdt), w2_ref[...],
                preferred_element_type=jnp.float32) + b2_ref[...]
    h = jnp.maximum(h, 0.0)
    # decoder: Linear(E, 2E) -> ReLU
    h = jnp.dot(h.astype(cdt), w3_ref[...],
                preferred_element_type=jnp.float32) + b3_ref[...]
    h = jnp.maximum(h, 0.0)
    # decoder: Linear(2E, input_dim) -> Sigmoid
    h = jnp.dot(h.astype(cdt), w4_ref[...],
                preferred_element_type=jnp.float32) + b4_ref[...]
    o_ref[...] = jax.nn.sigmoid(h).astype(o_ref.dtype)


def prepare_params(params, compute_dtype=jnp.bfloat16):
    """Cast weights to the matmul dtype and biases to (1, out) f32 ONCE.

    Call this outside the hot path / cache the result so the per-call wrapper
    does no parameter astype/pad work.
    """
    prepped = {}
    for i in range(1, 5):
        prepped[f"w{i}"] = _maybe_cast(params[f"w{i}"], compute_dtype)
        b = params[f"b{i}"]
        if b.ndim == 1:
            b = b[None, :]
        prepped[f"b{i}"] = _maybe_cast(b, jnp.float32)
    return prepped


def _pick_tile(batch, batch_tile):
    """Batch-tile selection: as large as requested, aligned to 16 rows, but with
    >=2 grid steps when the batch is big enough (v7x has 2 TensorCores that are
    fed via the 'parallel' grid axis)."""
    bp = _round_up(batch, ROW_ALIGN)
    tile = _round_up(min(batch_tile, bp), ROW_ALIGN)
    steps = -(-bp // tile)
    if steps < 2 and bp >= 2 * MIN_PARALLEL_TILE:
        tile = _round_up(-(-bp // 2), ROW_ALIGN)
    return tile


def autoencoder_forward(x, params, *, batch_tile=2048,
                        compute_dtype=jnp.bfloat16, out_dtype=None):
    """x: (B, input_dim). params: from init_params() or prepare_params().

    batch_tile: rows per grid step (1024-4096 recommended for real workloads;
    collapses automatically for tiny batches).
    compute_dtype: matmul-operand dtype (bf16 recommended on all generations).
    out_dtype: output dtype; pass jnp.bfloat16 to halve the writeback stream if
    downstream tolerance allows (default: x.dtype).
    """
    B, D = x.shape
    out_dtype = x.dtype if out_dtype is None else out_dtype

    # No-ops when params were already run through prepare_params().
    p = prepare_params(params, compute_dtype)
    w1, b1, w2, b2 = p["w1"], p["b1"], p["w2"], p["b2"]
    w3, b3, w4, b4 = p["w3"], p["b3"], p["w4"], p["b4"]
    E2 = w1.shape[1]      # encoding_dim * 2
    E = w2.shape[1]       # encoding_dim

    tile = _pick_tile(B, batch_tile)
    grid = (pl.cdiv(B, tile),)   # last step may overrun B: clipped reads/writes,
                                 # garbage lands only in discarded rows.

    # Weights/biases: constant block index -> Pallas never re-DMAs them, they
    # stay resident in VMEM across the whole grid.
    rep = lambda shape: pl.BlockSpec(shape, lambda i: (0, 0))

    # Explicit VMEM limit with headroom (v5e scoped default is only 16 MiB;
    # v7x physical VMEM is 64 MiB). Feature dims are lane-padded to 128 inside
    # VMEM, so estimate with the padded widths.
    xsz = jnp.dtype(x.dtype).itemsize
    csz = jnp.dtype(compute_dtype).itemsize
    osz = max(jnp.dtype(out_dtype).itemsize, 2)
    Da, Ea, E2a = _round_up(D, 128), _round_up(E, 128), _round_up(E2, 128)
    est = (2 * tile * Da * xsz                                   # x tile, double-buffered
           + 2 * tile * Da * osz                                 # out tile, double-buffered
           + 2 * (Da * E2a + E2a * Ea + Ea * E2a + E2a * Da) * csz   # weights
           + 2 * 8 * (E2a + Ea + E2a + Da) * 4                   # biases (sublane-padded)
           + 4 * tile * max(Da, Ea, E2a) * 4)                    # live f32 intermediates
    vmem_limit = int(min(48 * 1024 * 1024, max(16 * 1024 * 1024, 2 * est)))

    out = pl.pallas_call(
        autoencoder_kernel,
        out_shape=jax.ShapeDtypeStruct((B, D), out_dtype),
        grid_spec=pltpu.PrefetchScalarGridSpec(
            num_scalar_prefetch=0,
            grid=grid,
            in_specs=[
                pl.BlockSpec((tile, D), lambda i: (i, 0)),  # x tile (unpadded feature dim)
                rep((D, E2)), rep((1, E2)),                 # layer 1
                rep((E2, E)), rep((1, E)),                  # layer 2
                rep((E, E2)), rep((1, E2)),                 # layer 3
                rep((E2, D)), rep((1, D)),                  # layer 4
            ],
            out_specs=pl.BlockSpec((tile, D), lambda i: (i, 0)),
        ),
        compiler_params=pltpu.CompilerParams(
            dimension_semantics=("parallel",),
            vmem_limit_bytes=vmem_limit),
    )(x, w1, b1, w2, b2, w3, b3, w4, b4)

    return out


def init_params(key, input_dim, encoding_dim=64, dtype=jnp.float32):
    """Deterministic init mimicking PyTorch nn.Linear default (uniform +/-1/sqrt(fan_in)).
    Weights stored already transposed to (in, out)."""
    dims = [
        (input_dim, encoding_dim * 2),     # encoder layer 1
        (encoding_dim * 2, encoding_dim),  # encoder layer 2
        (encoding_dim, encoding_dim * 2),  # decoder layer 1
        (encoding_dim * 2, input_dim),     # decoder layer 2
    ]
    params = {}
    for idx, (fan_in, fan_out) in enumerate(dims, start=1):
        key, kw, kb = jax.random.split(key, 3)
        bound = 1.0 / jnp.sqrt(jnp.asarray(fan_in, dtype))
        params[f"w{idx}"] = jax.random.uniform(
            kw, (fan_in, fan_out), dtype, minval=-bound, maxval=bound)
        params[f"b{idx}"] = jax.random.uniform(
            kb, (1, fan_out), dtype, minval=-bound, maxval=bound)
    return params


def reference_forward(x, params):
    """Plain-JAX reference (mirrors the PyTorch module)."""
    h = jnp.maximum(x @ params["w1"] + params["b1"], 0.0)
    h = jnp.maximum(h @ params["w2"] + params["b2"], 0.0)
    h = jnp.maximum(h @ params["w3"] + params["b3"], 0.0)
    return jax.nn.sigmoid(h @ params["w4"] + params["b4"])


if __name__ == "__main__":
    key = jax.random.PRNGKey(0)
    key, kx = jax.random.split(key)

    B, INPUT_DIM, ENCODING_DIM = 16, 32, 64
    x = jax.random.normal(kx, (B, INPUT_DIM), dtype=jnp.float32)
    params = init_params(key, INPUT_DIM, ENCODING_DIM)
    ref = reference_forward(x, params)

    # Exact path (f32 matmul operands): must match the JAX reference tightly.
    out_f32 = jax.block_until_ready(
        autoencoder_forward(x, prepare_params(params, jnp.float32),
                            compute_dtype=jnp.float32))
    assert out_f32.shape == (B, INPUT_DIM)
    assert jnp.allclose(out_f32, ref, atol=1e-5, rtol=1e-5), "f32 mismatch vs reference"

    # Fast path (bf16 matmul operands, f32 accumulation/epilogue).
    prepped = prepare_params(params, jnp.bfloat16)
    out_bf16 = jax.block_until_ready(autoencoder_forward(x, prepped))
    assert out_bf16.shape == (B, INPUT_DIM)
    assert jnp.allclose(out_bf16, ref, atol=2e-2, rtol=2e-2), "bf16 mismatch vs reference"

    # Multi-step grid with a partial final batch tile (no wrapper-side batch
    # padding) and bf16 output writeback.
    key, kx2 = jax.random.split(key)
    B2 = 600
    x2 = jax.random.normal(kx2, (B2, INPUT_DIM), dtype=jnp.float32)
    ref2 = reference_forward(x2, params)
    out2 = jax.block_until_ready(
        autoencoder_forward(x2, prepped, batch_tile=256, out_dtype=jnp.bfloat16))
    assert out2.shape == (B2, INPUT_DIM)
    assert jnp.allclose(out2.astype(jnp.float32), ref2, atol=3e-2, rtol=3e-2), \
        "multi-tile / bf16-out mismatch vs reference"

    print("KERNEL_OK")
</pallas_src>

<mosaic_0001>
module attributes {stable_mosaic.version = 11 : i64} {
  func.func @autoencoder_kernel(%arg0: i32, %arg1: memref<16x32xf32, #tpu.memory_space<vmem>>, %arg2: memref<32x128xf32, #tpu.memory_space<vmem>>, %arg3: memref<1x128xf32, #tpu.memory_space<vmem>>, %arg4: memref<128x64xf32, #tpu.memory_space<vmem>>, %arg5: memref<1x64xf32, #tpu.memory_space<vmem>>, %arg6: memref<64x128xf32, #tpu.memory_space<vmem>>, %arg7: memref<1x128xf32, #tpu.memory_space<vmem>>, %arg8: memref<128x32xf32, #tpu.memory_space<vmem>>, %arg9: memref<1x32xf32, #tpu.memory_space<vmem>>, %arg10: memref<16x32xf32, #tpu.memory_space<vmem>>) attributes {dimension_semantics = [#tpu.dimension_semantics<parallel>], iteration_bounds = array<i64: 1>, scalar_prefetch = 0 : i64, scratch_operands = 0 : i64, tpu.core_type = #tpu.core_type<tc>, window_params = [{transform_indices = @transform_0, window_bounds = array<i64: 16, 32>}, {pipeline_mode = #tpu.pipeline_mode<synchronous>, transform_indices = @transform_1, window_bounds = array<i64: 32, 128>}, {pipeline_mode = #tpu.pipeline_mode<synchronous>, transform_indices = @transform_2, window_bounds = array<i64: 1, 128>}, {pipeline_mode = #tpu.pipeline_mode<synchronous>, transform_indices = @transform_3, window_bounds = array<i64: 128, 64>}, {pipeline_mode = #tpu.pipeline_mode<synchronous>, transform_indices = @transform_4, window_bounds = array<i64: 1, 64>}, {pipeline_mode = #tpu.pipeline_mode<synchronous>, transform_indices = @transform_5, window_bounds = array<i64: 64, 128>}, {pipeline_mode = #tpu.pipeline_mode<synchronous>, transform_indices = @transform_6, window_bounds = array<i64: 1, 128>}, {pipeline_mode = #tpu.pipeline_mode<synchronous>, transform_indices = @transform_7, window_bounds = array<i64: 128, 32>}, {pipeline_mode = #tpu.pipeline_mode<synchronous>, transform_indices = @transform_8, window_bounds = array<i64: 1, 32>}, {transform_indices = @transform_9, window_bounds = array<i64: 16, 32>}]} {
    %c0 = arith.constant 0 : index
    %c0_0 = arith.constant 0 : index
    %0 = vector.load %arg1[%c0, %c0_0] : memref<16x32xf32, #tpu.memory_space<vmem>>, vector<16x32xf32>
    %c0_1 = arith.constant 0 : index
    %c0_2 = arith.constant 0 : index
    %1 = vector.load %arg2[%c0_1, %c0_2] : memref<32x128xf32, #tpu.memory_space<vmem>>, vector<32x128xf32>
    %cst = arith.constant dense<0.000000e+00> : vector<16x128xf32>
    %2 = tpu.matmul %0, %1, %cst {dimension_numbers = #tpu.dot_dimension_numbers<[1], [0], [0], [1], [0, 0, 1, 1], [], []>} : vector<16x32xf32>, vector<32x128xf32>, vector<16x128xf32> -> vector<16x128xf32>
    %c0_3 = arith.constant 0 : index
    %c0_4 = arith.constant 0 : index
    %3 = vector.load %arg3[%c0_3, %c0_4] : memref<1x128xf32, #tpu.memory_space<vmem>>, vector<1x128xf32>
    %4 = vector.broadcast %3 : vector<1x128xf32> to vector<16x128xf32>
    %5 = arith.addf %2, %4 : vector<16x128xf32>
    %cst_5 = arith.constant 0.000000e+00 : f32
    %6 = vector.broadcast %cst_5 : f32 to vector<16x128xf32>
    %7 = arith.maximumf %5, %6 : vector<16x128xf32>
    %c0_6 = arith.constant 0 : index
    %c0_7 = arith.constant 0 : index
    %8 = vector.load %arg4[%c0_6, %c0_7] : memref<128x64xf32, #tpu.memory_space<vmem>>, vector<128x64xf32>
    %cst_8 = arith.constant dense<0.000000e+00> : vector<16x64xf32>
    %9 = tpu.matmul %7, %8, %cst_8 {dimension_numbers = #tpu.dot_dimension_numbers<[1], [0], [0], [1], [0, 0, 1, 1], [], []>} : vector<16x128xf32>, vector<128x64xf32>, vector<16x64xf32> -> vector<16x64xf32>
    %c0_9 = arith.constant 0 : index
    %c0_10 = arith.constant 0 : index
    %10 = vector.load %arg5[%c0_9, %c0_10] : memref<1x64xf32, #tpu.memory_space<vmem>>, vector<1x64xf32>
    %11 = vector.broadcast %10 : vector<1x64xf32> to vector<16x64xf32>
    %12 = arith.addf %9, %11 : vector<16x64xf32>
    %cst_11 = arith.constant 0.000000e+00 : f32
    %13 = vector.broadcast %cst_11 : f32 to vector<16x64xf32>
    %14 = arith.maximumf %12, %13 : vector<16x64xf32>
    %c0_12 = arith.constant 0 : index
    %c0_13 = arith.constant 0 : index
    %15 = vector.load %arg6[%c0_12, %c0_13] : memref<64x128xf32, #tpu.memory_space<vmem>>, vector<64x128xf32>
    %cst_14 = arith.constant dense<0.000000e+00> : vector<16x128xf32>
    %16 = tpu.matmul %14, %15, %cst_14 {dimension_numbers = #tpu.dot_dimension_numbers<[1], [0], [0], [1], [0, 0, 1, 1], [], []>} : vector<16x64xf32>, vector<64x128xf32>, vector<16x128xf32> -> vector<16x128xf32>
    %c0_15 = arith.constant 0 : index
    %c0_16 = arith.constant 0 : index
    %17 = vector.load %arg7[%c0_15, %c0_16] : memref<1x128xf32, #tpu.memory_space<vmem>>, vector<1x128xf32>
    %18 = vector.broadcast %17 : vector<1x128xf32> to vector<16x128xf32>
    %19 = arith.addf %16, %18 : vector<16x128xf32>
    %cst_17 = arith.constant 0.000000e+00 : f32
    %20 = vector.broadcast %cst_17 : f32 to vector<16x128xf32>
    %21 = arith.maximumf %19, %20 : vector<16x128xf32>
    %c0_18 = arith.constant 0 : index
    %c0_19 = arith.constant 0 : index
    %22 = vector.load %arg8[%c0_18, %c0_19] : memref<128x32xf32, #tpu.memory_space<vmem>>, vector<128x32xf32>
    %cst_20 = arith.constant dense<0.000000e+00> : vector<16x32xf32>
    %23 = tpu.matmul %21, %22, %cst_20 {dimension_numbers = #tpu.dot_dimension_numbers<[1], [0], [0], [1], [0, 0, 1, 1], [], []>} : vector<16x128xf32>, vector<128x32xf32>, vector<16x32xf32> -> vector<16x32xf32>
    %c0_21 = arith.constant 0 : index
    %c0_22 = arith.constant 0 : index
    %24 = vector.load %arg9[%c0_21, %c0_22] : memref<1x32xf32, #tpu.memory_space<vmem>>, vector<1x32xf32>
    %25 = vector.broadcast %24 : vector<1x32xf32> to vector<16x32xf32>
    %26 = arith.addf %23, %25 : vector<16x32xf32>
    %27 = arith.negf %26 : vector<16x32xf32>
    %28 = math.exp %27 : vector<16x32xf32>
    %cst_23 = arith.constant 1.000000e+00 : f32
    %29 = vector.broadcast %cst_23 : f32 to vector<16x32xf32>
    %30 = arith.addf %29, %28 : vector<16x32xf32>
    %31 = arith.divf %29, %30 : vector<16x32xf32>
    %c0_24 = arith.constant 0 : index
    %c0_25 = arith.constant 0 : index
    %32 = vector.load %arg10[%c0_24, %c0_25] : memref<16x32xf32, #tpu.memory_space<vmem>>, vector<16x32xf32>
    tpu.vector_store %arg10[%c0_24, %c0_25], %31 {strides = array<i32>} : memref<16x32xf32, #tpu.memory_space<vmem>>, vector<16x32xf32>,
    return
  }
  func.func @transform_0(%arg0: i32) -> (i32, i32) {
    %c0_i32 = arith.constant 0 : i32
    %c0_i32_0 = arith.constant 0 : i32
    return %arg0, %c0_i32 : i32, i32
  }
  func.func @transform_1(%arg0: i32) -> (i32, i32) {
    %c0_i32 = arith.constant 0 : i32
    %c0_i32_0 = arith.constant 0 : i32
    %c0_i32_1 = arith.constant 0 : i32
    return %c0_i32, %c0_i32_0 : i32, i32
  }
  func.func @transform_2(%arg0: i32) -> (i32, i32) {
    %c0_i32 = arith.constant 0 : i32
    %c0_i32_0 = arith.constant 0 : i32
    %c0_i32_1 = arith.constant 0 : i32
    return %c0_i32, %c0_i32_0 : i32, i32
  }
  func.func @transform_3(%arg0: i32) -> (i32, i32) {
    %c0_i32 = arith.constant 0 : i32
    %c0_i32_0 = arith.constant 0 : i32
    %c0_i32_1 = arith.constant 0 : i32
    return %c0_i32, %c0_i32_0 : i32, i32
  }
  func.func @transform_4(%arg0: i32) -> (i32, i32) {
    %c0_i32 = arith.constant 0 : i32
    %c0_i32_0 = arith.constant 0 : i32
    %c0_i32_1 = arith.constant 0 : i32
    return %c0_i32, %c0_i32_0 : i32, i32
  }
  func.func @transform_5(%arg0: i32) -> (i32, i32) {
    %c0_i32 = arith.constant 0 : i32
    %c0_i32_0 = arith.constant 0 : i32
    %c0_i32_1 = arith.constant 0 : i32
    return %c0_i32, %c0_i32_0 : i32, i32
  }
  func.func @transform_6(%arg0: i32) -> (i32, i32) {
    %c0_i32 = arith.constant 0 : i32
    %c0_i32_0 = arith.constant 0 : i32
    %c0_i32_1 = arith.constant 0 : i32
    return %c0_i32, %c0_i32_0 : i32, i32
  }
  func.func @transform_7(%arg0: i32) -> (i32, i32) {
    %c0_i32 = arith.constant 0 : i32
    %c0_i32_0 = arith.constant 0 : i32
    %c0_i32_1 = arith.constant 0 : i32
    return %c0_i32, %c0_i32_0 : i32, i32
  }
  func.func @transform_8(%arg0: i32) -> (i32, i32) {
    %c0_i32 = arith.constant 0 : i32
    %c0_i32_0 = arith.constant 0 : i32
    %c0_i32_1 = arith.constant 0 : i32
    return %c0_i32, %c0_i32_0 : i32, i32
  }
  func.func @transform_9(%arg0: i32) -> (i32, i32) {
    %c0_i32 = arith.constant 0 : i32
    %c0_i32_0 = arith.constant 0 : i32
    return %arg0, %c0_i32 : i32, i32
  }
}

</mosaic_0001>

<llo_original>
// kernel: tpu_custom_call.1
$region0: #{tpu_custom_call.1}
  #allocation0 [shape = 'u32[]', space=smem, size = 0x4, offset = 0x4, fixed_abs, tag = 'smem constant byte address 0x4 - core index']
  #allocation1 [shape = 'u32[144,128]{1,0:T(1,128)}', space=vmem, size = 0x12000, scoped, tag = 'internal scratch']
  %s0 = inlined_call_operand.vmem [shape: f32[16,32], index: 0, kind: input, shape index: {}]
  %s1 = inlined_call_operand.vmem [shape: f32[32,128], index: 1, kind: input, shape index: {}]
  %s2 = inlined_call_operand.vmem [shape: f32[1,128], index: 2, kind: input, shape index: {}]
  %s3 = inlined_call_operand.vmem [shape: f32[128,64], index: 3, kind: input, shape index: {}]
  %s4 = inlined_call_operand.vmem [shape: f32[1,64], index: 4, kind: input, shape index: {}]
  %s5 = inlined_call_operand.vmem [shape: f32[64,128], index: 5, kind: input, shape index: {}]
  %s6 = inlined_call_operand.vmem [shape: f32[1,128], index: 6, kind: input, shape index: {}]
  %s7 = inlined_call_operand.vmem [shape: f32[128,32], index: 7, kind: input, shape index: {}]
  %s8 = inlined_call_operand.vmem [shape: f32[1,32], index: 8, kind: input, shape index: {}]
  %s9 = inlined_call_operand.hbm [shape: f32[16,32], index: 9, kind: output, shape index: {}]
  %s10 = sld [smem:[#allocation0]]
  $region46: #{tpu_custom_call.1} parent=0
    _
  %s12 = ssub.s32 1, %s10
  %s13 = scalar_select 0, %s12, %s10
  $region1: #{tpu_custom_call.1} parent=0
    #allocation2 [shape = 'u8[8192]{0}', space=vmem, size = 0x2000, scoped, tag = 'output window, operand 0, single buffered']
    #allocation3 [shape = 's32[1]{0}', space=sflag, size = 0x4, scoped, tag = 'scoped memory for tpu_custom_call.1']
    %14 = vsyncpa [#allocation3], 0
    // Predicated region
    $region2: #{tpu_custom_call.1} parent=1 // pred_check
      _
    $region3: #{tpu_custom_call.1} parent=1 // pred_check_branch
      %16 = sbr.rel (0) target = $region5
    $region4: #{tpu_custom_call.1} parent=1 // pred_region
      _
    $region5: #{tpu_custom_call.1} parent=1 // pred_fallthru
      _
    // Predicated region
    $region6: #{tpu_custom_call.1} parent=1 // pred_check
      _
    $region7: #{tpu_custom_call.1} parent=1 // pred_check_branch
      %18 = sbr.rel (0) target = $region9
    $region8: #{tpu_custom_call.1} parent=1 // pred_region
      _
    $region9: #{tpu_custom_call.1} parent=1 // pred_fallthru
      _
    // Predicated region
    $region10: #{tpu_custom_call.1} parent=1 // pred_check
      _
    $region11: #{tpu_custom_call.1} parent=1 // pred_check_branch
      %20 = sbr.rel (0) target = $region13
    $region12: #{tpu_custom_call.1} parent=1 // pred_region
      _
    $region13: #{tpu_custom_call.1} parent=1 // pred_fallthru
      _
    // Predicated region
    $region14: #{tpu_custom_call.1} parent=1 // pred_check
      _
    $region15: #{tpu_custom_call.1} parent=1 // pred_check_branch
      %22 = sbr.rel (0) target = $region17
    $region16: #{tpu_custom_call.1} parent=1 // pred_region
      _
    $region17: #{tpu_custom_call.1} parent=1 // pred_fallthru
      _
    // Predicated region
    $region18: #{tpu_custom_call.1} parent=1 // pred_check
      _
    $region19: #{tpu_custom_call.1} parent=1 // pred_check_branch
      %24 = sbr.rel (0) target = $region21
    $region20: #{tpu_custom_call.1} parent=1 // pred_region
      _
    $region21: #{tpu_custom_call.1} parent=1 // pred_fallthru
      _
    // Predicated region
    $region22: #{tpu_custom_call.1} parent=1 // pred_check
      _
    $region23: #{tpu_custom_call.1} parent=1 // pred_check_branch
      %26 = sbr.rel (0) target = $region25
    $region24: #{tpu_custom_call.1} parent=1 // pred_region
      _
    $region25: #{tpu_custom_call.1} parent=1 // pred_fallthru
      _
    // Predicated region
    $region26: #{tpu_custom_call.1} parent=1 // pred_check
      _
    $region27: #{tpu_custom_call.1} parent=1 // pred_check_branch
      %28 = sbr.rel (0) target = $region29
    $region28: #{tpu_custom_call.1} parent=1 // pred_region
      _
    $region29: #{tpu_custom_call.1} parent=1 // pred_fallthru
      _
    // Predicated region
    $region30: #{tpu_custom_call.1} parent=1 // pred_check
      _
    $region31: #{tpu_custom_call.1} parent=1 // pred_check_branch
      %30 = sbr.rel (0) target = $region33
    $region32: #{tpu_custom_call.1} parent=1 // pred_region
      _
    $region33: #{tpu_custom_call.1} parent=1 // pred_fallthru
      _
    // Predicated region
    $region34: #{tpu_custom_call.1} parent=1 // pred_check
      _
    $region35: #{tpu_custom_call.1} parent=1 // pred_check_branch
      %32 = sbr.rel (0) target = $region37
    $region36: #{tpu_custom_call.1} parent=1 // pred_region
      _
    $region37: #{tpu_custom_call.1} parent=1 // pred_fallthru
      _
    %v33 = vld [vmem:[%s0] sm:$0xff]
    %v34 = vld [vmem:[%s0 + $0x8] sm:$0xff]
    %v35 = vld [vmem:[%s1] sm:$0xff]
    %v36 = vld [vmem:[%s1 + $0x8] sm:$0xff]
    %v37 = vld [vmem:[%s1 + $0x10] sm:$0xff]
    %v38 = vld [vmem:[%s1 + $0x18] sm:$0xff]
    %v39 = vld [vmem:[%s2] sm:$0x1]
    %v41 = vlaneseq
    %v42 = vshrl.u32 %v41, 7
    %v43 = vsub.s32 0, %v42
    %v44 = vrot.slane %v39, %v43
    %vm46 = vcmask 261120
    %v48 = vsel %vm46, %v33, 0
    %v51 = vsel %vm46, %v34, 0
    %53 = vmatprep.subr.mxu0 0.0
    %54 = vmatpush1.msra.mxu0 %v35
    %55 = vmatprep.subr.mxu0 0.0
    %56 = vmatpush1.msra.mxu0 %v36
    %57 = vmatprep.subr.mxu0 0.0
    %58 = vmatpush1.msra.mxu0 %v37
    %59 = vmatprep.subr.mxu0 0.0
    %60 = vmatpush1.msra.mxu0 %v38
    %61 = vmatprep.subr.mxu0 0.0
    %62 = vmatpush1.msra.mxu0 0.0
    %63 = vmatprep.subr.mxu0 0.0
    %64 = vmatpush1.msra.mxu0 0.0
    %65 = vmatprep.subr.mxu0 0.0
    %66 = vmatpush1.msra.mxu0 0.0
    %67 = vmatprep.subr.mxu0 0.0
    %68 = vmatpush1.msra.mxu0 0.0
    %69 = vmatprep.subr.mxu0 0.0
    %70 = vmatpush1.msra.mxu0 0.0
    %71 = vmatprep.subr.mxu0 0.0
    %72 = vmatpush1.msra.mxu0 0.0
    %73 = vmatprep.subr.mxu0 0.0
    %74 = vmatpush1.msra.mxu0 0.0
    %75 = vmatprep.subr.mxu0 0.0
    %76 = vmatpush1.msra.mxu0 0.0
    %77 = vmatprep.subr.mxu0 0.0
    %78 = vmatpush1.msra.mxu0 0.0
    %79 = vmatprep.subr.mxu0 0.0
    %80 = vmatpush1.msra.mxu0 0.0
    %81 = vmatprep.subr.mxu0 0.0
    %82 = vmatpush1.msra.mxu0 0.0
    %83 = vmatprep.subr.mxu0 0.0
    %84 = vmatpush1.msra.mxu0 0.0
    %85 = vmatprep.subr.mxu0 0.0
    %86 = vmatpush1.msra.mxu0 0.0
    %87 = vmatprep.subr.mxu0 0.0
    %88 = vmatpush1.msra.mxu0 0.0
    %89 = vmatprep.subr.mxu0 0.0
    %90 = vmatpush1.msra.mxu0 0.0
    %91 = vmatprep.subr.mxu0 0.0
    %92 = vmatpush1.msra.mxu0 0.0
    %93 = vmatprep.subr.mxu0 0.0
    %94 = vmatpush1.msra.mxu0 0.0
    %95 = vmatprep.subr.mxu0 0.0
    %96 = vmatpush1.msra.mxu0 0.0
    %97 = vmatprep.subr.mxu0 0.0
    %98 = vmatpush1.msra.mxu0 0.0
    %99 = vmatprep.subr.mxu0 0.0
    %100 = vmatpush1.msra.mxu0 0.0
    %101 = vmatprep.subr.mxu0 0.0
    %102 = vmatpush1.msra.mxu0 0.0
    %103 = vmatprep.subr.mxu0 0.0
    %104 = vmatpush1.msra.mxu0 0.0
    %105 = vmatprep.subr.mxu0 0.0
    %106 = vmatpush1.msra.mxu0 0.0
    %107 = vmatprep.subr.mxu0 0.0
    %108 = vmatpush1.msra.mxu0 0.0
    %109 = vmatprep.subr.mxu0 0.0
    %110 = vmatpush1.msra.mxu0 0.0
    %111 = vmatprep.subr.mxu0 0.0
    %112 = vmatpush1.msra.mxu0 0.0
    %113 = vmatprep.subr.mxu0 0.0
    %114 = vmatpush1.msra.mxu0 0.0
    %115 = vmatprep.subr.mxu0 0.0
    %116 = vmatpush1.msra.mxu0 0.0
    %117 = vmatprep.mubr.f32.mxu0 0.0
    %118 = vmatmul.mubr.f32.gmra.mrb[0].mxu0 %v48
    %v119 = vpop.f32.mrb[0].mxu0
    %v120 = vadd.f32 %v44, %v119
    %v121 = vpop.f32.mrb[0].mxu0
    %122 = vmatprep.mubr.f32.mxu0 0.0
    %123 = vmatmul.mubr.f32.gmra.mrb[0].mxu0 %v51
    %v124 = vpop.f32.mrb[0].mxu0
    %v125 = vadd.f32 %v44, %v124
    %v126 = vpop.f32.mrb[0].mxu0
    %127 = vdwg.mxu0
    %v128 = vmax.f32 %v120, 0.0
    %v129 = vmax.f32 %v125, 0.0
    %v130 = vld [vmem:[%s3] sm:$0xff]
    %v131 = vld [vmem:[%s3 + $0x8] sm:$0xff]
    %v132 = vld [vmem:[%s3 + $0x10] sm:$0xff]
    %v133 = vld [vmem:[%s3 + $0x18] sm:$0xff]
    %v134 = vld [vmem:[%s3 + $0x20] sm:$0xff]
    %v135 = vld [vmem:[%s3 + $0x28] sm:$0xff]
    %v136 = vld [vmem:[%s3 + $0x30] sm:$0xff]
    %v137 = vld [vmem:[%s3 + $0x38] sm:$0xff]
    %v138 = vld [vmem:[%s3 + $0x40] sm:$0xff]
    %v139 = vld [vmem:[%s3 + $0x48] sm:$0xff]
    %v140 = vld [vmem:[%s3 + $0x50] sm:$0xff]
    %v141 = vld [vmem:[%s3 + $0x58] sm:$0xff]
    %v142 = vld [vmem:[%s3 + $0x60] sm:$0xff]
    %v143 = vld [vmem:[%s3 + $0x68] sm:$0xff]
    %v144 = vld [vmem:[%s3 + $0x70] sm:$0xff]
    %v145 = vld [vmem:[%s3 + $0x78] sm:$0xff]
    %v146 = vld [vmem:[%s4] sm:$0x1]
    %v148 = vlaneseq
    %v149 = vshrl.u32 %v148, 7
    %v150 = vsub.s32 0, %v149
    %v151 = vrot.slane %v146, %v150
    %153 = vmatprep.subr.mxu0 0.0
    %154 = vmatpush1.msra.mxu0 %v130
    %155 = vmatprep.subr.mxu0 0.0
    %156 = vmatpush1.msra.mxu0 %v131
    %157 = vmatprep.subr.mxu0 0.0
    %158 = vmatpush1.msra.mxu0 %v132
    %159 = vmatprep.subr.mxu0 0.0
    %160 = vmatpush1.msra.mxu0 %v133
    %161 = vmatprep.subr.mxu0 0.0
    %162 = vmatpush1.msra.mxu0 %v134
    %163 = vmatprep.subr.mxu0 0.0
    %164 = vmatpush1.msra.mxu0 %v135
    %165 = vmatprep.subr.mxu0 0.0
    %166 = vmatpush1.msra.mxu0 %v136
    %167 = vmatprep.subr.mxu0 0.0
    %168 = vmatpush1.msra.mxu0 %v137
    %169 = vmatprep.subr.mxu0 0.0
    %170 = vmatpush1.msra.mxu0 %v138
    %171 = vmatprep.subr.mxu0 0.0
    %172 = vmatpush1.msra.mxu0 %v139
    %173 = vmatprep.subr.mxu0 0.0
    %174 = vmatpush1.msra.mxu0 %v140
    %175 = vmatprep.subr.mxu0 0.0
    %176 = vmatpush1.msra.mxu0 %v141
    %177 = vmatprep.subr.mxu0 0.0
    %178 = vmatpush1.msra.mxu0 %v142
    %179 = vmatprep.subr.mxu0 0.0
    %180 = vmatpush1.msra.mxu0 %v143
    %181 = vmatprep.subr.mxu0 0.0
    %182 = vmatpush1.msra.mxu0 %v144
    %183 = vmatprep.subr.mxu0 0.0
    %184 = vmatpush1.msra.mxu0 %v145
    %185 = vmatprep.subr.mxu0 0.0
    %186 = vmatpush1.msra.mxu0 0.0
    %187 = vmatprep.subr.mxu0 0.0
    %188 = vmatpush1.msra.mxu0 0.0
    %189 = vmatprep.subr.mxu0 0.0
    %190 = vmatpush1.msra.mxu0 0.0
    %191 = vmatprep.subr.mxu0 0.0
    %192 = vmatpush1.msra.mxu0 0.0
    %193 = vmatprep.subr.mxu0 0.0
    %194 = vmatpush1.msra.mxu0 0.0
    %195 = vmatprep.subr.mxu0 0.0
    %196 = vmatpush1.msra.mxu0 0.0
    %197 = vmatprep.subr.mxu0 0.0
    %198 = vmatpush1.msra.mxu0 0.0
    %199 = vmatprep.subr.mxu0 0.0
    %200 = vmatpush1.msra.mxu0 0.0
    %201 = vmatprep.subr.mxu0 0.0
    %202 = vmatpush1.msra.mxu0 0.0
    %203 = vmatprep.subr.mxu0 0.0
    %204 = vmatpush1.msra.mxu0 0.0
    %205 = vmatprep.subr.mxu0 0.0
    %206 = vmatpush1.msra.mxu0 0.0
    %207 = vmatprep.subr.mxu0 0.0
    %208 = vmatpush1.msra.mxu0 0.0
    %209 = vmatprep.subr.mxu0 0.0
    %210 = vmatpush1.msra.mxu0 0.0
    %211 = vmatprep.subr.mxu0 0.0
    %212 = vmatpush1.msra.mxu0 0.0
    %213 = vmatprep.subr.mxu0 0.0
    %214 = vmatpush1.msra.mxu0 0.0
    %215 = vmatprep.subr.mxu0 0.0
    %216 = vmatpush1.msra.mxu0 0.0
    %217 = vmatprep.mubr.f32.mxu0 0.0
    %218 = vmatmul.mubr.f32.gmra.mrb[0].mxu0 %v128
    %v219 = vpop.f32.mrb[0].mxu0
    %v220 = vadd.f32 %v151, %v219
    %v221 = vpop.f32.mrb[0].mxu0
    %222 = vmatprep.mubr.f32.mxu0 0.0
    %223 = vmatmul.mubr.f32.gmra.mrb[0].mxu0 %v129
    %v224 = vpop.f32.mrb[0].mxu0
    %v225 = vadd.f32 %v151, %v224
    %v226 = vpop.f32.mrb[0].mxu0
    %227 = vdwg.mxu0
    %v228 = vmax.f32 %v220, 0.0
    %v229 = vmax.f32 %v225, 0.0
    %v230 = vld [vmem:[%s5] sm:$0xff]
    %v231 = vld [vmem:[%s5 + $0x8] sm:$0xff]
    %v232 = vld [vmem:[%s5 + $0x10] sm:$0xff]
    %v233 = vld [vmem:[%s5 + $0x18] sm:$0xff]
    %v234 = vld [vmem:[%s5 + $0x20] sm:$0xff]
    %v235 = vld [vmem:[%s5 + $0x28] sm:$0xff]
    %v236 = vld [vmem:[%s5 + $0x30] sm:$0xff]
    %v237 = vld [vmem:[%s5 + $0x38] sm:$0xff]
    %v238 = vld [vmem:[%s6] sm:$0x1]
    %v240 = vlaneseq
    %v241 = vshrl.u32 %v240, 7
    %v242 = vsub.s32 0, %v241
    %v243 = vrot.slane %v238, %v242
    %vm245 = vcmask 523264
    %v247 = vsel %vm245, %v228, 0
    %v250 = vsel %vm245, %v229, 0
    %252 = vmatprep.subr.mxu0 0.0
    %253 = vmatpush1.msra.mxu0 %v230
    %254 = vmatprep.subr.mxu0 0.0
    %255 = vmatpush1.msra.mxu0 %v231
    %256 = vmatprep.subr.mxu0 0.0
    %257 = vmatpush1.msra.mxu0 %v232
    %258 = vmatprep.subr.mxu0 0.0
    %259 = vmatpush1.msra.mxu0 %v233
    %260 = vmatprep.subr.mxu0 0.0
    %261 = vmatpush1.msra.mxu0 %v234
    %262 = vmatprep.subr.mxu0 0.0
    %263 = vmatpush1.msra.mxu0 %v235
    %264 = vmatprep.subr.mxu0 0.0
    %265 = vmatpush1.msra.mxu0 %v236
    %266 = vmatprep.subr.mxu0 0.0
    %267 = vmatpush1.msra.mxu0 %v237
    %268 = vmatprep.subr.mxu0 0.0
    %269 = vmatpush1.msra.mxu0 0.0
    %270 = vmatprep.subr.mxu0 0.0
    %271 = vmatpush1.msra.mxu0 0.0
    %272 = vmatprep.subr.mxu0 0.0
    %273 = vmatpush1.msra.mxu0 0.0
    %274 = vmatprep.subr.mxu0 0.0
    %275 = vmatpush1.msra.mxu0 0.0
    %276 = vmatprep.subr.mxu0 0.0
    %277 = vmatpush1.msra.mxu0 0.0
    %278 = vmatprep.subr.mxu0 0.0
    %279 = vmatpush1.msra.mxu0 0.0
    %280 = vmatprep.subr.mxu0 0.0
    %281 = vmatpush1.msra.mxu0 0.0
    %282 = vmatprep.subr.mxu0 0.0
    %283 = vmatpush1.msra.mxu0 0.0
    %284 = vmatprep.subr.mxu0 0.0
    %285 = vmatpush1.msra.mxu0 0.0
    %286 = vmatprep.subr.mxu0 0.0
    %287 = vmatpush1.msra.mxu0 0.0
    %288 = vmatprep.subr.mxu0 0.0
    %289 = vmatpush1.msra.mxu0 0.0
    %290 = vmatprep.subr.mxu0 0.0
    %291 = vmatpush1.msra.mxu0 0.0
    %292 = vmatprep.subr.mxu0 0.0
    %293 = vmatpush1.msra.mxu0 0.0
    %294 = vmatprep.subr.mxu0 0.0
    %295 = vmatpush1.msra.mxu0 0.0
    %296 = vmatprep.subr.mxu0 0.0
    %297 = vmatpush1.msra.mxu0 0.0
    %298 = vmatprep.subr.mxu0 0.0
    %299 = vmatpush1.msra.mxu0 0.0
    %300 = vmatprep.subr.mxu0 0.0
    %301 = vmatpush1.msra.mxu0 0.0
    %302 = vmatprep.subr.mxu0 0.0
    %303 = vmatpush1.msra.mxu0 0.0
    %304 = vmatprep.subr.mxu0 0.0
    %305 = vmatpush1.msra.mxu0 0.0
    %306 = vmatprep.subr.mxu0 0.0
    %307 = vmatpush1.msra.mxu0 0.0
    %308 = vmatprep.subr.mxu0 0.0
    %309 = vmatpush1.msra.mxu0 0.0
    %310 = vmatprep.subr.mxu0 0.0
    %311 = vmatpush1.msra.mxu0 0.0
    %312 = vmatprep.subr.mxu0 0.0
    %313 = vmatpush1.msra.mxu0 0.0
    %314 = vmatprep.subr.mxu0 0.0
    %315 = vmatpush1.msra.mxu0 0.0
    %316 = vmatprep.mubr.f32.mxu0 0.0
    %317 = vmatmul.mubr.f32.gmra.mrb[0].mxu0 %v247
    %v318 = vpop.f32.mrb[0].mxu0
    %v319 = vadd.f32 %v243, %v318
    %v320 = vpop.f32.mrb[0].mxu0
    %321 = vmatprep.mubr.f32.mxu0 0.0
    %322 = vmatmul.mubr.f32.gmra.mrb[0].mxu0 %v250
    %v323 = vpop.f32.mrb[0].mxu0
    %v324 = vadd.f32 %v243, %v323
    %v325 = vpop.f32.mrb[0].mxu0
    %326 = vdwg.mxu0
    %v327 = vmax.f32 %v319, 0.0
    %v328 = vmax.f32 %v324, 0.0
    %v329 = vld [vmem:[%s7] sm:$0xff]
    %v330 = vld [vmem:[%s7 + $0x8] sm:$0xff]
    %v331 = vld [vmem:[%s7 + $0x10] sm:$0xff]
    %v332 = vld [vmem:[%s7 + $0x18] sm:$0xff]
    %v333 = vld [vmem:[%s7 + $0x20] sm:$0xff]
    %v334 = vld [vmem:[%s7 + $0x28] sm:$0xff]
    %v335 = vld [vmem:[%s7 + $0x30] sm:$0xff]
    %v336 = vld [vmem:[%s7 + $0x38] sm:$0xff]
    %v337 = vld [vmem:[%s7 + $0x40] sm:$0xff]
    %v338 = vld [vmem:[%s7 + $0x48] sm:$0xff]
    %v339 = vld [vmem:[%s7 + $0x50] sm:$0xff]
    %v340 = vld [vmem:[%s7 + $0x58] sm:$0xff]
    %v341 = vld [vmem:[%s7 + $0x60] sm:$0xff]
    %v342 = vld [vmem:[%s7 + $0x68] sm:$0xff]
    %v343 = vld [vmem:[%s7 + $0x70] sm:$0xff]
    %v344 = vld [vmem:[%s7 + $0x78] sm:$0xff]
    %v345 = vld [vmem:[%s8] sm:$0x1]
    %v347 = vlaneseq
    %v348 = vshrl.u32 %v347, 7
    %v349 = vsub.s32 0, %v348
    %v350 = vrot.slane %v345, %v349
    %352 = vmatprep.subr.mxu0 0.0
    %353 = vmatpush1.msra.mxu0 %v329
    %354 = vmatprep.subr.mxu0 0.0
    %355 = vmatpush1.msra.mxu0 %v330
    %356 = vmatprep.subr.mxu0 0.0
    %357 = vmatpush1.msra.mxu0 %v331
    %358 = vmatprep.subr.mxu0 0.0
    %359 = vmatpush1.msra.mxu0 %v332
    %360 = vmatprep.subr.mxu0 0.0
    %361 = vmatpush1.msra.mxu0 %v333
    %362 = vmatprep.subr.mxu0 0.0
    %363 = vmatpush1.msra.mxu0 %v334
    %364 = vmatprep.subr.mxu0 0.0
    %365 = vmatpush1.msra.mxu0 %v335
    %366 = vmatprep.subr.mxu0 0.0
    %367 = vmatpush1.msra.mxu0 %v336
    %368 = vmatprep.subr.mxu0 0.0
    %369 = vmatpush1.msra.mxu0 %v337
    %370 = vmatprep.subr.mxu0 0.0
    %371 = vmatpush1.msra.mxu0 %v338
    %372 = vmatprep.subr.mxu0 0.0
    %373 = vmatpush1.msra.mxu0 %v339
    %374 = vmatprep.subr.mxu0 0.0
    %375 = vmatpush1.msra.mxu0 %v340
    %376 = vmatprep.subr.mxu0 0.0
    %377 = vmatpush1.msra.mxu0 %v341
    %378 = vmatprep.subr.mxu0 0.0
    %379 = vmatpush1.msra.mxu0 %v342
    %380 = vmatprep.subr.mxu0 0.0
    %381 = vmatpush1.msra.mxu0 %v343
    %382 = vmatprep.subr.mxu0 0.0
    %383 = vmatpush1.msra.mxu0 %v344
    %384 = vmatprep.subr.mxu0 0.0
    %385 = vmatpush1.msra.mxu0 0.0
    %386 = vmatprep.subr.mxu0 0.0
    %387 = vmatpush1.msra.mxu0 0.0
    %388 = vmatprep.subr.mxu0 0.0
    %389 = vmatpush1.msra.mxu0 0.0
    %390 = vmatprep.subr.mxu0 0.0
    %391 = vmatpush1.msra.mxu0 0.0
    %392 = vmatprep.subr.mxu0 0.0
    %393 = vmatpush1.msra.mxu0 0.0
    %394 = vmatprep.subr.mxu0 0.0
    %395 = vmatpush1.msra.mxu0 0.0
    %396 = vmatprep.subr.mxu0 0.0
    %397 = vmatpush1.msra.mxu0 0.0
    %398 = vmatprep.subr.mxu0 0.0
    %399 = vmatpush1.msra.mxu0 0.0
    %400 = vmatprep.subr.mxu0 0.0
    %401 = vmatpush1.msra.mxu0 0.0
    %402 = vmatprep.subr.mxu0 0.0
    %403 = vmatpush1.msra.mxu0 0.0
    %404 = vmatprep.subr.mxu0 0.0
    %405 = vmatpush1.msra.mxu0 0.0
    %406 = vmatprep.subr.mxu0 0.0
    %407 = vmatpush1.msra.mxu0 0.0
    %408 = vmatprep.subr.mxu0 0.0
    %409 = vmatpush1.msra.mxu0 0.0
    %410 = vmatprep.subr.mxu0 0.0
    %411 = vmatpush1.msra.mxu0 0.0
    %412 = vmatprep.subr.mxu0 0.0
    %413 = vmatpush1.msra.mxu0 0.0
    %414 = vmatprep.subr.mxu0 0.0
    %415 = vmatpush1.msra.mxu0 0.0
    %416 = vmatprep.mubr.f32.mxu0 0.0
    %417 = vmatmul.mubr.f32.gmra.mrb[0].mxu0 %v327
    %v418 = vpop.f32.mrb[0].mxu0
    %v419 = vadd.f32 %v350, %v418
    %v420 = vpop.f32.mrb[0].mxu0
    %421 = vmatprep.mubr.f32.mxu0 0.0
    %422 = vmatmul.mubr.f32.gmra.mrb[0].mxu0 %v328
    %v423 = vpop.f32.mrb[0].mxu0
    %v424 = vadd.f32 %v350, %v423
    %v425 = vpop.f32.mrb[0].mxu0
    %426 = vdwg.mxu0
    %v427 = vxor.u32 %v419, 2147483648
    %v428 = vxor.u32 %v424, 2147483648
    %v429 = vmul.f32 %v427, 1.442695
    %v430 = vpow.pop %v429
    %v431 = vmul.f32 %v428, 1.442695
    %v432 = vpow.pop %v431
    %v433 = vadd.f32 %v430, 1.0
    %v434 = vadd.f32 %v432, 1.0
    %v435 = vrcp.pop %v433
    %v436 = vmul.f32 1.0, %v435
    %v437 = vrcp.pop %v434
    %v438 = vmul.f32 1.0, %v437
    %439 = vst.msk [vmem:[#allocation2] sm:$0xff] %vm46, %v436
    %440 = vst.msk [vmem:[#allocation2 + $0x8] sm:$0xff] %vm46, %v438
    // Predicated region
    $region38: #{tpu_custom_call.1} parent=1 // pred_check
      _
    $region39: #{tpu_custom_call.1} parent=1 // pred_check_branch
      %442 = sbr.rel (0) target = $region41
    $region40: #{tpu_custom_call.1} parent=1 // pred_region
      %s444 = ssub.s32 256, 256
      %445 = vsyncadd [#allocation3], %s444
      %s446 = sshll.u32 [#allocation2], 4
      %s447 = int_to_ptr.vmem [resolvable:$true] %s446
      %452 = dma.vmem_to_hbm [thread:$0]  %s447, 256, %s9, [#allocation3], 128, 128, 8
    $region41: #{tpu_custom_call.1} parent=1 // pred_fallthru
      _
    // Predicated region
    $region42: #{tpu_custom_call.1} parent=1 // pred_check
      _
    $region43: #{tpu_custom_call.1} parent=1 // pred_check_branch
      %454 = sbr.rel (0) target = $region45
    $region44: #{tpu_custom_call.1} parent=1 // pred_region
      %455 = dma.done [#allocation3], 256
    $region45: #{tpu_custom_call.1} parent=1 // pred_fallthru
      _
    %456 = vsyncpa [#allocation3], 1

</llo_original>
